<compile_context>
chip_gen: v6e
topology: v6e:2x2x1
jax: 0.10.0
libtpu: 0.0.40
codegen_flags: <defaults>
</compile_context>

<pallas_src>
import functools

import jax
import jax.numpy as jnp
from jax.experimental import pallas as pl
from jax.experimental.pallas import tpu as pltpu


def _round_up(x, m):
    return (x + m - 1) // m * m


def _charcnn_fused_kernel(xt_ref, table_ref, w_ref, b_ref, mask_ref, o_ref, *,
                          n_tok_pad, emb_size, maxlen, r_max, ks_max, k_pad):
    # xt_ref:   (L, TB)          int32 char ids (batch on lanes)
    # table_ref:(n_tok_pad, E)   bf16 embedding table (zero-padded rows)
    # w_ref:    (K_pad, F_pad)   bf16 packed conv weights (all branches)
    # b_ref:    (1, F_pad)       f32 packed conv biases
    # mask_ref: (r_max, 1, F_pad) f32 additive mask (-4.0 past branch's R)
    # o_ref:    (TB, F_pad)      f32 pooled features (lane-dense)
    L = maxlen
    E = emb_size
    TB = xt_ref.shape[1]

    # ---- fused embedding lookup: one-hot (bf16) x table (bf16) on the MXU ----
    ids = xt_ref[...]                                              # (L, TB)
    iota = jax.lax.broadcasted_iota(jnp.int32, (L, TB, n_tok_pad), 2)
    onehot = jnp.where(ids[:, :, None] == iota, 1.0, 0.0).astype(jnp.bfloat16)
    emb = jnp.dot(onehot.reshape(L * TB, n_tok_pad), table_ref[...],
                  preferred_element_type=jnp.float32)              # (L*TB, E)
    x_emb = emb.astype(jnp.bfloat16).reshape(L, TB, E)             # (L, TB, E)

    # ---- zero-pad sequence axis so every branch's im2col window is in range --
    pad_rows = (r_max + ks_max - 1) - L        # == ks_max - ks_min
    if pad_rows > 0:
        x_emb = jnp.concatenate(
            [x_emb, jnp.zeros((pad_rows, TB, E), jnp.bfloat16)], axis=0)

    # ---- im2col: one 128-deep MXU push serves every branch -------------------
    parts = [x_emb[s:s + r_max] for s in range(ks_max)]            # (r_max,TB,E)
    extra = k_pad - ks_max * E
    if extra > 0:
        parts.append(jnp.zeros((r_max, TB, extra), jnp.bfloat16))
    lhs = jnp.concatenate(parts, axis=-1).reshape(r_max * TB, k_pad)

    acc = jnp.dot(lhs, w_ref[...], preferred_element_type=jnp.float32)
    acc = acc.reshape(r_max, TB, w_ref.shape[1])                   # (r_max,TB,F)

    # ---- epilogue in f32: bias + tanh + masked max-pool over positions -------
    y = jnp.tanh(acc + b_ref[...])
    y = y + mask_ref[...]                       # invalid positions -> below -1
    o_ref[...] = jnp.max(y, axis=0)             # (TB, F_pad), lane-dense store


class CharCNNPallas:
    """JAX/Pallas port of CharCNN (eval-mode forward)."""

    def __init__(self, n_ch_tokens, ch_maxlen, ch_emb_size,
                 ch_feature_maps, ch_kernel_sizes, key, batch_tile=256):
        assert len(ch_feature_maps) == len(ch_kernel_sizes)
        assert batch_tile % 128 == 0
        self.n_ch_tokens = n_ch_tokens
        self.ch_maxlen = ch_maxlen
        self.ch_emb_size = ch_emb_size
        self.ch_feature_maps = list(ch_feature_maps)
        self.ch_kernel_sizes = list(ch_kernel_sizes)
        self.batch_tile = batch_tile

        self.ks_min = min(ch_kernel_sizes)
        self.ks_max = max(ch_kernel_sizes)
        self.r_max = ch_maxlen - self.ks_min + 1
        self.f_total = sum(ch_feature_maps)
        self.f_pad = _round_up(self.f_total, 128)
        self.k_pad = _round_up(self.ks_max * ch_emb_size, 128)
        self.n_tok_pad = _round_up(n_ch_tokens, 128)

        keys = jax.random.split(key, 1 + len(ch_feature_maps))

        # Embedding: uniform(-0.5/E, 0.5/E), padding_idx=0 row zeroed
        # (matches init_ch()).
        initrange = 0.5 / ch_emb_size
        emb = jax.random.uniform(
            keys[0], (n_ch_tokens, ch_emb_size),
            minval=-initrange, maxval=initrange, dtype=jnp.float32)
        self.emb_table = emb.at[0].set(0.0)
        table_pad = jnp.zeros((self.n_tok_pad, ch_emb_size), jnp.float32)
        table_pad = table_pad.at[:n_ch_tokens].set(self.emb_table)
        self.emb_table_bf16 = table_pad.astype(jnp.bfloat16)

        # Conv weights: xavier_uniform on (F, 1, ks, E); biases zero.
        # Packed layout: W_all[s*E + e, off_j + f] = w_j[f, 0, s, e].
        w_all = jnp.zeros((self.k_pad, self.f_pad), jnp.float32)
        b_all = jnp.zeros((1, self.f_pad), jnp.float32)
        mask = jnp.zeros((self.r_max, 1, self.f_pad), jnp.float32)
        self.branch_params = []   # f32 originals kept for the pure-JAX reference
        off = 0
        for i, (fm, ks) in enumerate(zip(ch_feature_maps, ch_kernel_sizes)):
            fan_in = 1 * ks * ch_emb_size
            fan_out = fm * ks * ch_emb_size
            bound = (6.0 / (fan_in + fan_out)) ** 0.5
            w = jax.random.uniform(
                keys[1 + i], (fm, ks, ch_emb_size),
                minval=-bound, maxval=bound, dtype=jnp.float32)
            b = jnp.zeros((fm,), jnp.float32)
            self.branch_params.append((w, b, ks))

            w_cols = jnp.transpose(w, (1, 2, 0)).reshape(ks * ch_emb_size, fm)
            w_all = w_all.at[:ks * ch_emb_size, off:off + fm].set(w_cols)
            b_all = b_all.at[0, off:off + fm].set(b)

            r_i = ch_maxlen - ks + 1          # this branch's reduced_length
            col_mask = jnp.where(jnp.arange(self.r_max) < r_i, 0.0, -4.0)
            mask = mask.at[:, 0, off:off + fm].set(
                jnp.broadcast_to(col_mask[:, None], (self.r_max, fm)))
            off += fm

        self.w_all = w_all.astype(jnp.bfloat16)   # bf16 MXU operand
        self.b_all = b_all                        # f32 epilogue
        self.mask = mask                          # f32 epilogue

    def __call__(self, x):
        B, length = x.shape
        assert length == self.ch_maxlen
        L = self.ch_maxlen

        # Batch tiling: one tile if B is small, else 256-row tiles (mult of 128
        # so the lane-major ids block stays legal), padded with id 0 (zero row).
        if B <= self.batch_tile:
            tb = _round_up(B, 8)
            bp = tb
        else:
            tb = self.batch_tile
            bp = _round_up(B, tb)

        xt = jnp.transpose(x.astype(jnp.int32))          # (L, B): batch on lanes
        if bp != B:
            xt = jnp.pad(xt, ((0, 0), (0, bp - B)))

        kernel = functools.partial(
            _charcnn_fused_kernel,
            n_tok_pad=self.n_tok_pad, emb_size=self.ch_emb_size, maxlen=L,
            r_max=self.r_max, ks_max=self.ks_max, k_pad=self.k_pad)

        out_p = pl.pallas_call(
            kernel,
            out_shape=jax.ShapeDtypeStruct((bp, self.f_pad), jnp.float32),
            grid=(bp // tb,),
            in_specs=[
                pl.BlockSpec((L, tb), lambda i: (0, i)),
                pl.BlockSpec((self.n_tok_pad, self.ch_emb_size),
                             lambda i: (0, 0)),
                pl.BlockSpec((self.k_pad, self.f_pad), lambda i: (0, 0)),
                pl.BlockSpec((1, self.f_pad), lambda i: (0, 0)),
                pl.BlockSpec((self.r_max, 1, self.f_pad), lambda i: (0, 0, 0)),
            ],
            out_specs=pl.BlockSpec((tb, self.f_pad), lambda i: (i, 0)),
            compiler_params=pltpu.CompilerParams(
                dimension_semantics=("parallel",)),
        )(xt, self.emb_table_bf16, self.w_all, self.b_all, self.mask)

        # Strip batch / lane padding; dropout in eval mode is identity.
        return out_p[:B, :self.f_total]

    # Pure-JAX f32 reference of the PyTorch forward (for a sanity check).
    def reference(self, x):
        x_emb = jnp.take(self.emb_table, x, axis=0)      # (B, L, E)
        feats = []
        for (w, b, ks) in self.branch_params:
            R = self.ch_maxlen - ks + 1
            acc = jnp.zeros((x.shape[0], R, w.shape[0]), jnp.float32)
            for s in range(ks):
                acc = acc + jnp.einsum('bre,fe->brf',
                                       x_emb[:, s:s + R, :], w[:, s, :])
            y = jnp.tanh(acc + b[None, None, :])
            feats.append(jnp.max(y, axis=1))
        return jnp.concatenate(feats, axis=1)


if __name__ == "__main__":
    key = jax.random.PRNGKey(0)
    k_params, k_data = jax.random.split(key)

    n_ch_tokens = 50
    ch_maxlen = 8
    ch_emb_size = 32
    ch_feature_maps = [8, 16]
    ch_kernel_sizes = [2, 3]

    model = CharCNNPallas(n_ch_tokens, ch_maxlen, ch_emb_size,
                          ch_feature_maps, ch_kernel_sizes, k_params)

    x = jax.random.randint(k_data, (2, ch_maxlen), 0, n_ch_tokens,
                           dtype=jnp.int32)

    out = jax.block_until_ready(model(x))
    assert out.shape == (2, sum(ch_feature_maps))
    assert out.dtype == jnp.float32

    ref = model.reference(x)
    err = float(jnp.max(jnp.abs(out - ref)))
    assert err < 1e-2, f"max abs err {err}"
    print("KERNEL_OK")
</pallas_src>

<mosaic_0001>
module attributes {stable_mosaic.version = 11 : i64} {
  func.func @_charcnn_fused_kernel(%arg0: i32, %arg1: memref<8x8xi32, #tpu.memory_space<vmem>>, %arg2: memref<128x32xbf16, #tpu.memory_space<vmem>>, %arg3: memref<128x128xbf16, #tpu.memory_space<vmem>>, %arg4: memref<1x128xf32, #tpu.memory_space<vmem>>, %arg5: memref<7x1x128xf32, #tpu.memory_space<vmem>>, %arg6: memref<8x128xf32, #tpu.memory_space<vmem>>) attributes {dimension_semantics = [#tpu.dimension_semantics<parallel>], iteration_bounds = array<i64: 1>, scalar_prefetch = 0 : i64, scratch_operands = 0 : i64, tpu.core_type = #tpu.core_type<tc>, window_params = [{transform_indices = @transform_0, window_bounds = array<i64: 8, 8>}, {pipeline_mode = #tpu.pipeline_mode<synchronous>, transform_indices = @transform_1, window_bounds = array<i64: 128, 32>}, {pipeline_mode = #tpu.pipeline_mode<synchronous>, transform_indices = @transform_2, window_bounds = array<i64: 128, 128>}, {pipeline_mode = #tpu.pipeline_mode<synchronous>, transform_indices = @transform_3, window_bounds = array<i64: 1, 128>}, {pipeline_mode = #tpu.pipeline_mode<synchronous>, transform_indices = @transform_4, window_bounds = array<i64: 7, 1, 128>}, {transform_indices = @transform_5, window_bounds = array<i64: 8, 128>}]} {
    %c0 = arith.constant 0 : index
    %c0_0 = arith.constant 0 : index
    %0 = vector.load %arg1[%c0, %c0_0] : memref<8x8xi32, #tpu.memory_space<vmem>>, vector<8x8xi32>
    %1 = tpu.iota {dimensions = array<i32: 2>} : vector<8x8x128xi32>
    %2 = vector.shape_cast %0 : vector<8x8xi32> to vector<8x8x1xi32>
    %3 = vector.broadcast %2 : vector<8x8x1xi32> to vector<8x8x128xi32>
    %4 = arith.cmpi eq, %3, %1 : vector<8x8x128xi32>
    %cst = arith.constant 1.000000e+00 : f32
    %cst_1 = arith.constant 0.000000e+00 : f32
    %5 = vector.broadcast %cst : f32 to vector<8x8x128xf32>
    %6 = vector.broadcast %cst_1 : f32 to vector<8x8x128xf32>
    %7 = arith.select %4, %5, %6 : vector<8x8x128xi1>, vector<8x8x128xf32>
    %8 = arith.truncf %7 : vector<8x8x128xf32> to vector<8x8x128xbf16>
    %9 = vector.shape_cast %8 : vector<8x8x128xbf16> to vector<64x128xbf16>
    %c0_2 = arith.constant 0 : index
    %c0_3 = arith.constant 0 : index
    %10 = vector.load %arg2[%c0_2, %c0_3] : memref<128x32xbf16, #tpu.memory_space<vmem>>, vector<128x32xbf16>
    %cst_4 = arith.constant dense<0.000000e+00> : vector<64x32xf32>
    %11 = tpu.matmul %9, %10, %cst_4 {dimension_numbers = #tpu.dot_dimension_numbers<[1], [0], [0], [1], [0, 0, 1, 1], [], []>} : vector<64x128xbf16>, vector<128x32xbf16>, vector<64x32xf32> -> vector<64x32xf32>
    %12 = arith.truncf %11 : vector<64x32xf32> to vector<64x32xbf16>
    %13 = vector.shape_cast %12 : vector<64x32xbf16> to vector<8x8x32xbf16>
    %cst_5 = arith.constant 0.000000e+00 : bf16
    %14 = vector.broadcast %cst_5 : bf16 to vector<1x8x32xbf16>
    %15 = tpu.concatenate %13, %14 in 0 : vector<8x8x32xbf16>, vector<1x8x32xbf16> -> vector<9x8x32xbf16>
    %16 = vector.extract_strided_slice %15 {offsets = [0, 0, 0], sizes = [7, 8, 32], strides = [1, 1, 1]} : vector<9x8x32xbf16> to vector<7x8x32xbf16>
    %17 = vector.extract_strided_slice %15 {offsets = [1, 0, 0], sizes = [7, 8, 32], strides = [1, 1, 1]} : vector<9x8x32xbf16> to vector<7x8x32xbf16>
    %18 = vector.extract_strided_slice %15 {offsets = [2, 0, 0], sizes = [7, 8, 32], strides = [1, 1, 1]} : vector<9x8x32xbf16> to vector<7x8x32xbf16>
    %cst_6 = arith.constant 0.000000e+00 : bf16
    %19 = vector.broadcast %cst_6 : bf16 to vector<7x8x32xbf16>
    %20 = tpu.concatenate %16, %17, %18, %19 in 2 : vector<7x8x32xbf16>, vector<7x8x32xbf16>, vector<7x8x32xbf16>, vector<7x8x32xbf16> -> vector<7x8x128xbf16>
    %21 = vector.shape_cast %20 : vector<7x8x128xbf16> to vector<56x128xbf16>
    %c0_7 = arith.constant 0 : index
    %c0_8 = arith.constant 0 : index
    %22 = vector.load %arg3[%c0_7, %c0_8] : memref<128x128xbf16, #tpu.memory_space<vmem>>, vector<128x128xbf16>
    %cst_9 = arith.constant dense<0.000000e+00> : vector<56x128xf32>
    %23 = tpu.matmul %21, %22, %cst_9 {dimension_numbers = #tpu.dot_dimension_numbers<[1], [0], [0], [1], [0, 0, 1, 1], [], []>} : vector<56x128xbf16>, vector<128x128xbf16>, vector<56x128xf32> -> vector<56x128xf32>
    %24 = vector.shape_cast %23 : vector<56x128xf32> to vector<7x8x128xf32>
    %c0_10 = arith.constant 0 : index
    %c0_11 = arith.constant 0 : index
    %25 = vector.load %arg4[%c0_10, %c0_11] : memref<1x128xf32, #tpu.memory_space<vmem>>, vector<1x128xf32>
    %26 = vector.shape_cast %25 : vector<1x128xf32> to vector<1x1x128xf32>
    %27 = vector.broadcast %26 : vector<1x1x128xf32> to vector<7x8x128xf32>
    %28 = arith.addf %24, %27 : vector<7x8x128xf32>
    %29 = math.tanh %28 : vector<7x8x128xf32>
    %c0_12 = arith.constant 0 : index
    %c0_13 = arith.constant 0 : index
    %c0_14 = arith.constant 0 : index
    %30 = vector.load %arg5[%c0_12, %c0_13, %c0_14] : memref<7x1x128xf32, #tpu.memory_space<vmem>>, vector<7x1x128xf32>
    %31 = vector.broadcast %30 : vector<7x1x128xf32> to vector<7x8x128xf32>
    %32 = arith.addf %29, %31 : vector<7x8x128xf32>
    %cst_15 = arith.constant dense<0xFF800000> : vector<8x128xf32>
    %33 = vector.multi_reduction <maximumf>, %32, %cst_15 [0] : vector<7x8x128xf32> to vector<8x128xf32>
    %c0_16 = arith.constant 0 : index
    %c0_17 = arith.constant 0 : index
    %34 = vector.load %arg6[%c0_16, %c0_17] : memref<8x128xf32, #tpu.memory_space<vmem>>, vector<8x128xf32>
    tpu.vector_store %arg6[%c0_16, %c0_17], %33 {strides = array<i32>} : memref<8x128xf32, #tpu.memory_space<vmem>>, vector<8x128xf32>,
    return
  }
  func.func @transform_0(%arg0: i32) -> (i32, i32) {
    %c0_i32 = arith.constant 0 : i32
    %c0_i32_0 = arith.constant 0 : i32
    return %c0_i32, %arg0 : i32, i32
  }
  func.func @transform_1(%arg0: i32) -> (i32, i32) {
    %c0_i32 = arith.constant 0 : i32
    %c0_i32_0 = arith.constant 0 : i32
    %c0_i32_1 = arith.constant 0 : i32
    return %c0_i32, %c0_i32_0 : i32, i32
  }
  func.func @transform_2(%arg0: i32) -> (i32, i32) {
    %c0_i32 = arith.constant 0 : i32
    %c0_i32_0 = arith.constant 0 : i32
    %c0_i32_1 = arith.constant 0 : i32
    return %c0_i32, %c0_i32_0 : i32, i32
  }
  func.func @transform_3(%arg0: i32) -> (i32, i32) {
    %c0_i32 = arith.constant 0 : i32
    %c0_i32_0 = arith.constant 0 : i32
    %c0_i32_1 = arith.constant 0 : i32
    return %c0_i32, %c0_i32_0 : i32, i32
  }
  func.func @transform_4(%arg0: i32) -> (i32, i32, i32) {
    %c0_i32 = arith.constant 0 : i32
    %c0_i32_0 = arith.constant 0 : i32
    %c0_i32_1 = arith.constant 0 : i32
    %c0_i32_2 = arith.constant 0 : i32
    return %c0_i32, %c0_i32_0, %c0_i32_1 : i32, i32, i32
  }
  func.func @transform_5(%arg0: i32) -> (i32, i32) {
    %c0_i32 = arith.constant 0 : i32
    %c0_i32_0 = arith.constant 0 : i32
    return %arg0, %c0_i32 : i32, i32
  }
}

</mosaic_0001>

<llo_original>
// kernel: tpu_custom_call.1
$region0: #{tpu_custom_call.1}
  #allocation0 [shape = 'u32[]', space=smem, size = 0x4, offset = 0x4, fixed_abs, tag = 'smem constant byte address 0x4 - core index']
  #allocation1 [shape = 'u32[144,128]{1,0:T(1,128)}', space=vmem, size = 0x12000, scoped, tag = 'internal scratch']
  %s0 = inlined_call_operand.vmem [shape: s32[8,8], index: 0, kind: input, shape index: {}]
  %s1 = inlined_call_operand.vmem [shape: bf16[128,32], index: 1, kind: input, shape index: {}]
  %s2 = inlined_call_operand.vmem [shape: bf16[128,128], index: 2, kind: input, shape index: {}]
  %s3 = inlined_call_operand.vmem [shape: f32[1,128], index: 3, kind: input, shape index: {}]
  %s4 = inlined_call_operand.vmem [shape: f32[7,1,128], index: 4, kind: input, shape index: {}]
  %s5 = inlined_call_operand.hbm [shape: f32[8,128], index: 5, kind: output, shape index: {}]
  %s6 = sld [smem:[#allocation0]]
  $region30: #{tpu_custom_call.1} parent=0
    _
  %s8 = ssub.s32 1, %s6
  %s9 = scalar_select 0, %s8, %s6
  $region1: #{tpu_custom_call.1} parent=0
    #allocation2 [shape = 'u8[4096]{0}', space=vmem, size = 0x1000, scoped, tag = 'output window, operand 0, single buffered']
    #allocation3 [shape = 's32[1]{0}', space=sflag, size = 0x4, scoped, tag = 'scoped memory for tpu_custom_call.1']
    %10 = vsyncpa [#allocation3], 0
    // Predicated region
    $region2: #{tpu_custom_call.1} parent=1 // pred_check
      _
    $region3: #{tpu_custom_call.1} parent=1 // pred_check_branch
      %12 = sbr.rel (0) target = $region5
    $region4: #{tpu_custom_call.1} parent=1 // pred_region
      _
    $region5: #{tpu_custom_call.1} parent=1 // pred_fallthru
      _
    // Predicated region
    $region6: #{tpu_custom_call.1} parent=1 // pred_check
      _
    $region7: #{tpu_custom_call.1} parent=1 // pred_check_branch
      %14 = sbr.rel (0) target = $region9
    $region8: #{tpu_custom_call.1} parent=1 // pred_region
      _
    $region9: #{tpu_custom_call.1} parent=1 // pred_fallthru
      _
    // Predicated region
    $region10: #{tpu_custom_call.1} parent=1 // pred_check
      _
    $region11: #{tpu_custom_call.1} parent=1 // pred_check_branch
      %16 = sbr.rel (0) target = $region13
    $region12: #{tpu_custom_call.1} parent=1 // pred_region
      _
    $region13: #{tpu_custom_call.1} parent=1 // pred_fallthru
      _
    // Predicated region
    $region14: #{tpu_custom_call.1} parent=1 // pred_check
      _
    $region15: #{tpu_custom_call.1} parent=1 // pred_check_branch
      %18 = sbr.rel (0) target = $region17
    $region16: #{tpu_custom_call.1} parent=1 // pred_region
      _
    $region17: #{tpu_custom_call.1} parent=1 // pred_fallthru
      _
    // Predicated region
    $region18: #{tpu_custom_call.1} parent=1 // pred_check
      _
    $region19: #{tpu_custom_call.1} parent=1 // pred_check_branch
      %20 = sbr.rel (0) target = $region21
    $region20: #{tpu_custom_call.1} parent=1 // pred_region
      _
    $region21: #{tpu_custom_call.1} parent=1 // pred_fallthru
      _
    %v22 = vld [vmem:[%s0] sm:$0xff]
    %v23 = vlaneseq
    %v24 = vand.u32 %v23, 127
    %v25 = vlaneseq
    %v26 = vshrl.u32 %v25, 7
    %v27 = vsub.s32 0, %v26
    %v28 = vrot.slane %v22, %v27
    %30 = vbcast.lane.b32.xlu0 %v28, 256
    %v31 = vpop.permute.xlu0 %30
    %v32 = vlaneseq
    %v33 = vshrl.u32 %v32, 7
    %v34 = vsub.s32 1, %v33
    %v35 = vrot.slane %v22, %v34
    %37 = vbcast.lane.b32.xlu0 %v35, 256
    %v38 = vpop.permute.xlu0 %37
    %v39 = vlaneseq
    %v40 = vshrl.u32 %v39, 7
    %v41 = vsub.s32 2, %v40
    %v42 = vrot.slane %v22, %v41
    %44 = vbcast.lane.b32.xlu0 %v42, 256
    %v45 = vpop.permute.xlu0 %44
    %v46 = vlaneseq
    %v47 = vshrl.u32 %v46, 7
    %v48 = vsub.s32 3, %v47
    %v49 = vrot.slane %v22, %v48
    %51 = vbcast.lane.b32.xlu0 %v49, 256
    %v52 = vpop.permute.xlu0 %51
    %v53 = vlaneseq
    %v54 = vshrl.u32 %v53, 7
    %v55 = vsub.s32 4, %v54
    %v56 = vrot.slane %v22, %v55
    %58 = vbcast.lane.b32.xlu0 %v56, 256
    %v59 = vpop.permute.xlu0 %58
    %v60 = vlaneseq
    %v61 = vshrl.u32 %v60, 7
    %v62 = vsub.s32 5, %v61
    %v63 = vrot.slane %v22, %v62
    %65 = vbcast.lane.b32.xlu0 %v63, 256
    %v66 = vpop.permute.xlu0 %65
    %v67 = vlaneseq
    %v68 = vshrl.u32 %v67, 7
    %v69 = vsub.s32 6, %v68
    %v70 = vrot.slane %v22, %v69
    %72 = vbcast.lane.b32.xlu0 %v70, 256
    %v73 = vpop.permute.xlu0 %72
    %v74 = vlaneseq
    %v75 = vshrl.u32 %v74, 7
    %v76 = vsub.s32 7, %v75
    %v77 = vrot.slane %v22, %v76
    %79 = vbcast.lane.b32.xlu0 %v77, 256
    %v80 = vpop.permute.xlu0 %79
    %vm81 = vcmp.eq.s32.totalorder %v31, %v24
    %vm82 = vcmp.eq.s32.totalorder %v38, %v24
    %vm83 = vcmp.eq.s32.totalorder %v45, %v24
    %vm84 = vcmp.eq.s32.totalorder %v52, %v24
    %vm85 = vcmp.eq.s32.totalorder %v59, %v24
    %vm86 = vcmp.eq.s32.totalorder %v66, %v24
    %vm87 = vcmp.eq.s32.totalorder %v73, %v24
    %vm88 = vcmp.eq.s32.totalorder %v80, %v24
    %v89 = vsel %vm81, 1.0, 0.0
    %v90 = vsel %vm82, 1.0, 0.0
    %v91 = vsel %vm83, 1.0, 0.0
    %v92 = vsel %vm84, 1.0, 0.0
    %v93 = vsel %vm85, 1.0, 0.0
    %v94 = vsel %vm86, 1.0, 0.0
    %v95 = vsel %vm87, 1.0, 0.0
    %v96 = vsel %vm88, 1.0, 0.0
    %v97 = vpack.c.bf16 %v89, %v89
    %v98 = vpack.c.bf16 %v90, %v90
    %v99 = vpack.c.bf16 %v91, %v91
    %v100 = vpack.c.bf16 %v92, %v92
    %v101 = vpack.c.bf16 %v93, %v93
    %v102 = vpack.c.bf16 %v94, %v94
    %v103 = vpack.c.bf16 %v95, %v95
    %v104 = vpack.c.bf16 %v96, %v96
    %v105 = vld [vmem:[%s1] sm:$0xf]
    %v106 = vld [vmem:[%s1 + $0x4] sm:$0xf]
    %v107 = vld [vmem:[%s1 + $0x8] sm:$0xf]
    %v108 = vld [vmem:[%s1 + $0xc] sm:$0xf]
    %v109 = vld [vmem:[%s1 + $0x10] sm:$0xf]
    %v110 = vld [vmem:[%s1 + $0x14] sm:$0xf]
    %v111 = vld [vmem:[%s1 + $0x18] sm:$0xf]
    %v112 = vld [vmem:[%s1 + $0x1c] sm:$0xf]
    %v113 = vld [vmem:[%s1 + $0x20] sm:$0xf]
    %v114 = vld [vmem:[%s1 + $0x24] sm:$0xf]
    %v115 = vld [vmem:[%s1 + $0x28] sm:$0xf]
    %v116 = vld [vmem:[%s1 + $0x2c] sm:$0xf]
    %v117 = vld [vmem:[%s1 + $0x30] sm:$0xf]
    %v118 = vld [vmem:[%s1 + $0x34] sm:$0xf]
    %v119 = vld [vmem:[%s1 + $0x38] sm:$0xf]
    %v120 = vld [vmem:[%s1 + $0x3c] sm:$0xf]
    %v129 = vunpack.c.l.b16 %v97
    %v130 = vunpack.c.l.b16 %v98
    %v131 = vunpack.c.l.b16 %v99
    %v132 = vunpack.c.l.b16 %v100
    %v133 = vunpack.c.l.b16 %v101
    %v134 = vunpack.c.l.b16 %v102
    %v135 = vunpack.c.l.b16 %v103
    %v136 = vunpack.c.l.b16 %v104
    %v137 = vpack.c.b16 %v130, %v129
    %v138 = vpack.c.b16 %v132, %v131
    %v139 = vpack.c.b16 %v134, %v133
    %v140 = vpack.c.b16 %v136, %v135
    %v161 = vunpack.c.l.b16 %v105
    %v162 = vunpack.c.l.b16 %v106
    %v163 = vunpack.c.l.b16 %v107
    %v164 = vunpack.c.l.b16 %v108
    %v165 = vunpack.c.l.b16 %v109
    %v166 = vunpack.c.l.b16 %v110
    %v167 = vunpack.c.l.b16 %v111
    %v168 = vunpack.c.l.b16 %v112
    %v169 = vunpack.c.l.b16 %v113
    %v170 = vunpack.c.l.b16 %v114
    %v171 = vunpack.c.l.b16 %v115
    %v172 = vunpack.c.l.b16 %v116
    %v173 = vunpack.c.l.b16 %v117
    %v174 = vunpack.c.l.b16 %v118
    %v175 = vunpack.c.l.b16 %v119
    %v176 = vunpack.c.l.b16 %v120
    %v177 = vpack.c.b16 %v162, %v161
    %v178 = vpack.c.b16 %v164, %v163
    %v179 = vpack.c.b16 %v166, %v165
    %v180 = vpack.c.b16 %v168, %v167
    %v181 = vpack.c.b16 %v170, %v169
    %v182 = vpack.c.b16 %v172, %v171
    %v183 = vpack.c.b16 %v174, %v173
    %v184 = vpack.c.b16 %v176, %v175
    %193 = vmatprep.subr.bf16.mxu0 0
    %194 = vmatpush1.bf16.msra.mxu0 %v184
    %195 = vmatprep.subr.bf16.mxu0 0
    %196 = vmatpush1.bf16.msra.mxu0 %v183
    %197 = vmatprep.subr.bf16.mxu0 0
    %198 = vmatpush1.bf16.msra.mxu0 %v182
    %199 = vmatprep.subr.bf16.mxu0 0
    %200 = vmatpush1.bf16.msra.mxu0 %v181
    %201 = vmatprep.subr.bf16.mxu0 0
    %202 = vmatpush1.bf16.msra.mxu0 %v180
    %203 = vmatprep.subr.bf16.mxu0 0
    %204 = vmatpush1.bf16.msra.mxu0 %v179
    %205 = vmatprep.subr.bf16.mxu0 0
    %206 = vmatpush1.bf16.msra.mxu0 %v178
    %207 = vmatprep.subr.bf16.mxu0 0
    %208 = vmatpush1.bf16.msra.mxu0 %v177
    %209 = vmatprep.subr.bf16.mxu0 0
    %210 = vmatpush2.bf16.msra.mxu0 0
    %211 = vmatprep.subr.bf16.mxu0 0
    %212 = vmatpush2.bf16.msra.mxu0 0
    %213 = vmatprep.subr.bf16.mxu0 0
    %214 = vmatpush2.bf16.msra.mxu0 0
    %215 = vmatprep.subr.bf16.mxu0 0
    %216 = vmatpush2.bf16.msra.mxu0 0
    %217 = vmatprep.subr.bf16.mxu0 0
    %218 = vmatpush2.bf16.msra.mxu0 0
    %219 = vmatprep.subr.bf16.mxu0 0
    %220 = vmatpush2.bf16.msra.mxu0 0
    %221 = vmatprep.subr.bf16.mxu0 0
    %222 = vmatpush2.bf16.msra.mxu0 0
    %223 = vmatprep.subr.bf16.mxu0 0
    %224 = vmatpush2.bf16.msra.mxu0 0
    %225 = vmatprep.mubr.bf16.mxu0 0
    %226 = vmatmul.mubr.bf16.gmra.mxu0 %v137
    %v227 = vpop.f32.mrf.mxu0
    %v228 = vadd.f32 0.0, %v227
    %v229 = vpop.f32.mrf.mxu0
    %v230 = vpop.f32.mrf.mxu0
    %v231 = vadd.f32 0.0, %v230
    %v232 = vpop.f32.mrf.mxu0
    %233 = vmatprep.mubr.bf16.mxu0 0
    %234 = vmatmul.mubr.bf16.gmra.mxu0 %v138
    %v235 = vpop.f32.mrf.mxu0
    %v236 = vadd.f32 0.0, %v235
    %v237 = vpop.f32.mrf.mxu0
    %v238 = vpop.f32.mrf.mxu0
    %v239 = vadd.f32 0.0, %v238
    %v240 = vpop.f32.mrf.mxu0
    %241 = vmatprep.mubr.bf16.mxu0 0
    %242 = vmatmul.mubr.bf16.gmra.mxu0 %v139
    %v243 = vpop.f32.mrf.mxu0
    %v244 = vadd.f32 0.0, %v243
    %v245 = vpop.f32.mrf.mxu0
    %v246 = vpop.f32.mrf.mxu0
    %v247 = vadd.f32 0.0, %v246
    %v248 = vpop.f32.mrf.mxu0
    %249 = vmatprep.mubr.bf16.mxu0 0
    %250 = vmatmul.mubr.bf16.gmra.mxu0 %v140
    %v251 = vpop.f32.mrf.mxu0
    %v252 = vadd.f32 0.0, %v251
    %v253 = vpop.f32.mrf.mxu0
    %v254 = vpop.f32.mrf.mxu0
    %v255 = vadd.f32 0.0, %v254
    %v256 = vpop.f32.mrf.mxu0
    %257 = vdwg.mxu0
    %v258 = vpack.c.bf16 %v231, %v228
    %v259 = vpack.c.bf16 %v239, %v236
    %v260 = vpack.c.bf16 %v247, %v244
    %v261 = vpack.c.bf16 %v255, %v252
    %v266 = vunpack.c.l.b16 %v258
    %v267 = vunpack.c.h.b16 %v258
    %v268 = vunpack.c.l.b16 %v259
    %v269 = vunpack.c.h.b16 %v259
    %v270 = vunpack.c.l.b16 %v260
    %v271 = vunpack.c.h.b16 %v260
    %v272 = vunpack.c.l.b16 %v261
    %v273 = vunpack.c.h.b16 %v261
    %v274 = vpack.c.b16 %v266, %v266
    %v275 = vpack.c.b16 %v267, %v267
    %v276 = vpack.c.b16 %v268, %v268
    %v277 = vpack.c.b16 %v269, %v269
    %v278 = vpack.c.b16 %v270, %v270
    %v279 = vpack.c.b16 %v271, %v271
    %v280 = vpack.c.b16 %v272, %v272
    %v281 = vpack.c.b16 %v273, %v273
    %282 = vrot.lane.b32.xlu0 %v275, 32
    %v283 = vpop.permute.xlu0 %282
    %284 = vrot.lane.b32.xlu0 %v276, 32
    %v285 = vpop.permute.xlu0 %284
    %286 = vrot.lane.b32.xlu0 %v277, 32
    %v287 = vpop.permute.xlu0 %286
    %288 = vrot.lane.b32.xlu0 %v278, 32
    %v289 = vpop.permute.xlu0 %288
    %290 = vrot.lane.b32.xlu0 %v279, 32
    %v291 = vpop.permute.xlu0 %290
    %292 = vrot.lane.b32.xlu0 %v280, 32
    %v293 = vpop.permute.xlu0 %292
    %294 = vrot.lane.b32.xlu0 %v281, 32
    %v295 = vpop.permute.xlu0 %294
    %v297 = vunpack.c.l.b16 0
    %v298 = vpack.c.b16 %v297, %v297
    %299 = vrot.lane.b32.xlu0 %v276, 64
    %v300 = vpop.permute.xlu0 %299
    %301 = vrot.lane.b32.xlu0 %v277, 64
    %v302 = vpop.permute.xlu0 %301
    %303 = vrot.lane.b32.xlu0 %v278, 64
    %v304 = vpop.permute.xlu0 %303
    %305 = vrot.lane.b32.xlu0 %v279, 64
    %v306 = vpop.permute.xlu0 %305
    %307 = vrot.lane.b32.xlu0 %v280, 64
    %v308 = vpop.permute.xlu0 %307
    %309 = vrot.lane.b32.xlu0 %v281, 64
    %v310 = vpop.permute.xlu0 %309
    %311 = vrot.lane.b32.xlu0 %v298, 64
    %v312 = vpop.permute.xlu0 %311
    %vm313 = vcmask 261120
    %v316 = vsel %vm313, %v274, %v283
    %v319 = vsel %vm313, %v275, %v285
    %v322 = vsel %vm313, %v276, %v287
    %v325 = vsel %vm313, %v277, %v289
    %v328 = vsel %vm313, %v278, %v291
    %v331 = vsel %vm313, %v279, %v293
    %v334 = vsel %vm313, %v280, %v295
    %vm335 = vcmask 523264
    %v337 = vsel %vm335, %v316, %v300
    %v339 = vsel %vm335, %v319, %v302
    %v341 = vsel %vm335, %v322, %v304
    %v343 = vsel %vm335, %v325, %v306
    %v345 = vsel %vm335, %v328, %v308
    %v347 = vsel %vm335, %v331, %v310
    %v349 = vsel %vm335, %v334, %v312
    %vm350 = vcmask 785408
    %v352 = vsel %vm350, %v337, 0
    %v353 = vsel %vm350, %v339, 0
    %v354 = vsel %vm350, %v341, 0
    %v355 = vsel %vm350, %v343, 0
    %v356 = vsel %vm350, %v345, 0
    %v357 = vsel %vm350, %v347, 0
    %v358 = vsel %vm350, %v349, 0
    %v359 = vld [vmem:[%s2] sm:$0xf]
    %v360 = vld [vmem:[%s2 + $0x4] sm:$0xf]
    %v361 = vld [vmem:[%s2 + $0x8] sm:$0xf]
    %v362 = vld [vmem:[%s2 + $0xc] sm:$0xf]
    %v363 = vld [vmem:[%s2 + $0x10] sm:$0xf]
    %v364 = vld [vmem:[%s2 + $0x14] sm:$0xf]
    %v365 = vld [vmem:[%s2 + $0x18] sm:$0xf]
    %v366 = vld [vmem:[%s2 + $0x1c] sm:$0xf]
    %v367 = vld [vmem:[%s2 + $0x20] sm:$0xf]
    %v368 = vld [vmem:[%s2 + $0x24] sm:$0xf]
    %v369 = vld [vmem:[%s2 + $0x28] sm:$0xf]
    %v370 = vld [vmem:[%s2 + $0x2c] sm:$0xf]
    %v371 = vld [vmem:[%s2 + $0x30] sm:$0xf]
    %v372 = vld [vmem:[%s2 + $0x34] sm:$0xf]
    %v373 = vld [vmem:[%s2 + $0x38] sm:$0xf]
    %v374 = vld [vmem:[%s2 + $0x3c] sm:$0xf]
    %v382 = vunpack.c.l.b16 %v352
    %v383 = vunpack.c.l.b16 %v353
    %v384 = vunpack.c.l.b16 %v354
    %v385 = vunpack.c.l.b16 %v355
    %v386 = vunpack.c.l.b16 %v356
    %v387 = vunpack.c.l.b16 %v357
    %v388 = vunpack.c.l.b16 %v358
    %v389 = vpack.c.b16 %v383, %v382
    %v390 = vpack.c.b16 %v385, %v384
    %v391 = vpack.c.b16 %v387, %v386
    %v392 = vpack.c.b16 %v388, %v388
    %v413 = vunpack.c.l.b16 %v359
    %v414 = vunpack.c.l.b16 %v360
    %v415 = vunpack.c.l.b16 %v361
    %v416 = vunpack.c.l.b16 %v362
    %v417 = vunpack.c.l.b16 %v363
    %v418 = vunpack.c.l.b16 %v364
    %v419 = vunpack.c.l.b16 %v365
    %v420 = vunpack.c.l.b16 %v366
    %v421 = vunpack.c.l.b16 %v367
    %v422 = vunpack.c.l.b16 %v368
    %v423 = vunpack.c.l.b16 %v369
    %v424 = vunpack.c.l.b16 %v370
    %v425 = vunpack.c.l.b16 %v371
    %v426 = vunpack.c.l.b16 %v372
    %v427 = vunpack.c.l.b16 %v373
    %v428 = vunpack.c.l.b16 %v374
    %v429 = vpack.c.b16 %v414, %v413
    %v430 = vpack.c.b16 %v416, %v415
    %v431 = vpack.c.b16 %v418, %v417
    %v432 = vpack.c.b16 %v420, %v419
    %v433 = vpack.c.b16 %v422, %v421
    %v434 = vpack.c.b16 %v424, %v423
    %v435 = vpack.c.b16 %v426, %v425
    %v436 = vpack.c.b16 %v428, %v427
    %445 = vmatprep.subr.bf16.mxu0 0
    %446 = vmatpush1.bf16.msra.mxu0 %v436
    %447 = vmatprep.subr.bf16.mxu0 0
    %448 = vmatpush1.bf16.msra.mxu0 %v435
    %449 = vmatprep.subr.bf16.mxu0 0
    %450 = vmatpush1.bf16.msra.mxu0 %v434
    %451 = vmatprep.subr.bf16.mxu0 0
    %452 = vmatpush1.bf16.msra.mxu0 %v433
    %453 = vmatprep.subr.bf16.mxu0 0
    %454 = vmatpush1.bf16.msra.mxu0 %v432
    %455 = vmatprep.subr.bf16.mxu0 0
    %456 = vmatpush1.bf16.msra.mxu0 %v431
    %457 = vmatprep.subr.bf16.mxu0 0
    %458 = vmatpush1.bf16.msra.mxu0 %v430
    %459 = vmatprep.subr.bf16.mxu0 0
    %460 = vmatpush1.bf16.msra.mxu0 %v429
    %461 = vmatprep.subr.bf16.mxu0 0
    %462 = vmatpush2.bf16.msra.mxu0 0
    %463 = vmatprep.subr.bf16.mxu0 0
    %464 = vmatpush2.bf16.msra.mxu0 0
    %465 = vmatprep.subr.bf16.mxu0 0
    %466 = vmatpush2.bf16.msra.mxu0 0
    %467 = vmatprep.subr.bf16.mxu0 0
    %468 = vmatpush2.bf16.msra.mxu0 0
    %469 = vmatprep.subr.bf16.mxu0 0
    %470 = vmatpush2.bf16.msra.mxu0 0
    %471 = vmatprep.subr.bf16.mxu0 0
    %472 = vmatpush2.bf16.msra.mxu0 0
    %473 = vmatprep.subr.bf16.mxu0 0
    %474 = vmatpush2.bf16.msra.mxu0 0
    %475 = vmatprep.subr.bf16.mxu0 0
    %476 = vmatpush2.bf16.msra.mxu0 0
    %477 = vmatprep.mubr.bf16.mxu0 0
    %478 = vmatmul.mubr.bf16.gmra.mxu0 %v389
    %v479 = vpop.f32.mrf.mxu0
    %v480 = vadd.f32 0.0, %v479
    %v481 = vpop.f32.mrf.mxu0
    %v482 = vpop.f32.mrf.mxu0
    %v483 = vadd.f32 0.0, %v482
    %v484 = vpop.f32.mrf.mxu0
    %485 = vmatprep.mubr.bf16.mxu0 0
    %486 = vmatmul.mubr.bf16.gmra.mxu0 %v390
    %v487 = vpop.f32.mrf.mxu0
    %v488 = vadd.f32 0.0, %v487
    %v489 = vpop.f32.mrf.mxu0
    %v490 = vpop.f32.mrf.mxu0
    %v491 = vadd.f32 0.0, %v490
    %v492 = vpop.f32.mrf.mxu0
    %493 = vmatprep.mubr.bf16.mxu0 0
    %494 = vmatmul.mubr.bf16.gmra.mxu0 %v391
    %v495 = vpop.f32.mrf.mxu0
    %v496 = vadd.f32 0.0, %v495
    %v497 = vpop.f32.mrf.mxu0
    %v498 = vpop.f32.mrf.mxu0
    %v499 = vadd.f32 0.0, %v498
    %v500 = vpop.f32.mrf.mxu0
    %501 = vmatprep.mubr.bf16.mxu0 0
    %502 = vmatmul.mubr.bf16.gmra.mxu0 %v392
    %v503 = vpop.f32.mrf.mxu0
    %v504 = vadd.f32 0.0, %v503
    %v505 = vpop.f32.mrf.mxu0
    %v506 = vpop.f32.mrf.mxu0
    %v507 = vpop.f32.mrf.mxu0
    %508 = vdwg.mxu0
    %v509 = vld [vmem:[%s3] sm:$0x1]
    %v511 = vlaneseq
    %v512 = vshrl.u32 %v511, 7
    %v513 = vsub.s32 0, %v512
    %v514 = vrot.slane %v509, %v513
    %v516 = vadd.f32 %v480, %v514
    %v517 = vadd.f32 %v483, %v514
    %v518 = vadd.f32 %v488, %v514
    %v519 = vadd.f32 %v491, %v514
    %v520 = vadd.f32 %v496, %v514
    %v521 = vadd.f32 %v499, %v514
    %v522 = vadd.f32 %v504, %v514
    %v523 = vtanh.pop %v516
    %v524 = vtanh.pop %v517
    %v525 = vtanh.pop %v518
    %v526 = vtanh.pop %v519
    %v527 = vtanh.pop %v520
    %v528 = vtanh.pop %v521
    %v529 = vtanh.pop %v522
    %v530 = vld [vmem:[%s4] sm:$0x1]
    %v531 = vld [vmem:[%s4 + $0x1] sm:$0x1]
    %v532 = vld [vmem:[%s4 + $0x2] sm:$0x1]
    %v533 = vld [vmem:[%s4 + $0x3] sm:$0x1]
    %v534 = vld [vmem:[%s4 + $0x4] sm:$0x1]
    %v535 = vld [vmem:[%s4 + $0x5] sm:$0x1]
    %v536 = vld [vmem:[%s4 + $0x6] sm:$0x1]
    %v544 = vlaneseq
    %v545 = vshrl.u32 %v544, 7
    %v546 = vsub.s32 0, %v545
    %v547 = vrot.slane %v530, %v546
    %v548 = vlaneseq
    %v549 = vshrl.u32 %v548, 7
    %v550 = vsub.s32 0, %v549
    %v551 = vrot.slane %v531, %v550
    %v552 = vlaneseq
    %v553 = vshrl.u32 %v552, 7
    %v554 = vsub.s32 0, %v553
    %v555 = vrot.slane %v532, %v554
    %v556 = vlaneseq
    %v557 = vshrl.u32 %v556, 7
    %v558 = vsub.s32 0, %v557
    %v559 = vrot.slane %v533, %v558
    %v560 = vlaneseq
    %v561 = vshrl.u32 %v560, 7
    %v562 = vsub.s32 0, %v561
    %v563 = vrot.slane %v534, %v562
    %v564 = vlaneseq
    %v565 = vshrl.u32 %v564, 7
    %v566 = vsub.s32 0, %v565
    %v567 = vrot.slane %v535, %v566
    %v568 = vlaneseq
    %v569 = vshrl.u32 %v568, 7
    %v570 = vsub.s32 0, %v569
    %v571 = vrot.slane %v536, %v570
    %v579 = vadd.f32 %v523, %v547
    %v580 = vadd.f32 %v524, %v551
    %v581 = vadd.f32 %v525, %v555
    %v582 = vadd.f32 %v526, %v559
    %v583 = vadd.f32 %v527, %v563
    %v584 = vadd.f32 %v528, %v567
    %v585 = vadd.f32 %v529, %v571
    %v586 = vmax.f32 %v579, %v583
    %v587 = vmax.f32 %v580, %v584
    %v588 = vmax.f32 %v581, %v585
    %v589 = vmax.f32 %v586, %v587
    %v590 = vmax.f32 %v588, %v582
    %v591 = vmax.f32 %v589, %v590
    %592 = vst [vmem:[#allocation2] sm:$0xff] %v591
    // Predicated region
    $region22: #{tpu_custom_call.1} parent=1 // pred_check
      _
    $region23: #{tpu_custom_call.1} parent=1 // pred_check_branch
      %594 = sbr.rel (0) target = $region25
    $region24: #{tpu_custom_call.1} parent=1 // pred_region
      %s596 = ssub.s32 128, 128
      %597 = vsyncadd [#allocation3], %s596
      %s599 = sshll.u32 [#allocation2], 4
      %s600 = int_to_ptr.vmem [resolvable:$true] %s599
      %602 = dma.vmem_to_hbm [thread:$0]  %s600, 128, %s5, [#allocation3]
    $region25: #{tpu_custom_call.1} parent=1 // pred_fallthru
      _
    // Predicated region
    $region26: #{tpu_custom_call.1} parent=1 // pred_check
      _
    $region27: #{tpu_custom_call.1} parent=1 // pred_check_branch
      %604 = sbr.rel (0) target = $region29
    $region28: #{tpu_custom_call.1} parent=1 // pred_region
      %605 = dma.done [#allocation3], 128
    $region29: #{tpu_custom_call.1} parent=1 // pred_fallthru
      _
    %606 = vsyncpa [#allocation3], 1

</llo_original>
